<compile_context>
chip_gen: v7x
topology: tpu7x:2x2x1
jax: 0.10.0
libtpu: 0.0.40
codegen_flags: <defaults>
</compile_context>

<pallas_src>
import functools

import jax
import jax.numpy as jnp
from jax.experimental import pallas as pl
from jax.experimental.pallas import tpu as pltpu

LN_EPS = 1e-5
_KTILE_THRESHOLD_BYTES = 12 << 20   # weights larger than this get a K grid axis


def _round_up(x, m):
    return ((x + m - 1) // m) * m


def _sublane(dtype):
    # sublane packing of the second-minor dim: 8 rows for 4-byte dtypes,
    # 16 for bf16, 32 for 1-byte dtypes.
    return 8 * max(1, 4 // jnp.dtype(dtype).itemsize)


def _vmem_capacity_bytes():
    """Physical per-core VMEM; conservative (v7x-sized) fallback if unavailable."""
    try:
        cap = getattr(pltpu.get_tpu_info(), "vmem_capacity_bytes", None)
        if cap:
            return int(cap)
    except Exception:
        pass
    return 64 << 20


# --------------------------------------------------------------------------- kernels

def _fused_kernel(x_ref, w_ref, gamma_ref, beta_ref, o_ref, *, inv_n):
    # MXU matmul in the native input dtype; f32 accumulation.
    y = jnp.dot(x_ref[...], w_ref[...], preferred_element_type=jnp.float32)

    # One-pass LN stats.  Padded output lanes are exactly 0 (zero weight cols),
    # so the sums only see the true lanes; divide by the true out_size.
    s1 = jnp.sum(y, axis=-1, keepdims=True)
    s2 = jnp.sum(y * y, axis=-1, keepdims=True)
    mean = s1 * inv_n
    var = jnp.maximum(s2 * inv_n - mean * mean, 0.0)
    inv_std = jax.lax.rsqrt(var + LN_EPS)                 # EUP slot

    gamma = gamma_ref[...].astype(jnp.float32)
    beta = beta_ref[...].astype(jnp.float32)
    o_ref[...] = ((y - mean) * inv_std * gamma + beta).astype(o_ref.dtype)


def _fused_kernel_ktiled(x_ref, w_ref, gamma_ref, beta_ref, o_ref, acc_ref, *, inv_n):
    k = pl.program_id(1)

    @pl.when(k == 0)
    def _():
        acc_ref[...] = jnp.zeros_like(acc_ref)

    acc_ref[...] += jnp.dot(x_ref[...], w_ref[...],
                            preferred_element_type=jnp.float32)

    @pl.when(k == pl.num_programs(1) - 1)
    def _():
        y = acc_ref[...]
        s1 = jnp.sum(y, axis=-1, keepdims=True)
        s2 = jnp.sum(y * y, axis=-1, keepdims=True)
        mean = s1 * inv_n
        var = jnp.maximum(s2 * inv_n - mean * mean, 0.0)
        inv_std = jax.lax.rsqrt(var + LN_EPS)
        gamma = gamma_ref[...].astype(jnp.float32)
        beta = beta_ref[...].astype(jnp.float32)
        o_ref[...] = ((y - mean) * inv_std * gamma + beta).astype(o_ref.dtype)


# --------------------------------------------------------------------------- wrapper

def prepare_embedding_fc_params(w, gamma, beta):
    """Pad params once (hoisted out of the per-call path).

    w:     (in_size, out_size) -- PyTorch Linear weight, transposed so y = x @ w
    gamma: (out_size,)         -- LayerNorm weight
    beta:  (out_size,)         -- LayerNorm bias
    Returns (w_p, gamma_p, beta_p, out_size) with both weight dims padded to
    multiples of 128 (zero padding keeps LayerNorm exact).
    """
    in_size, out_size = w.shape
    in_p = _round_up(in_size, 128)
    out_p = _round_up(out_size, 128)
    w_p = w
    if (in_p, out_p) != (in_size, out_size):
        w_p = jnp.zeros((in_p, out_p), w.dtype).at[:in_size, :out_size].set(w)
    gamma_p = jnp.zeros((1, out_p), gamma.dtype).at[0, :out_size].set(gamma)
    beta_p = jnp.zeros((1, out_p), beta.dtype).at[0, :out_size].set(beta)
    return w_p, gamma_p, beta_p, out_size


def embedding_fc(x, w_p, gamma_p, beta_p, out_size, *, tile_b=None):
    """Fused Linear(bias=False) + LayerNorm on pre-padded params.

    x: (B, in_size).  w_p/gamma_p/beta_p from `prepare_embedding_fc_params`.
    Returns (B, out_size) in x.dtype.
    """
    B, in_size = x.shape
    in_p, out_p = w_p.shape
    assert in_p >= in_size and in_p % 128 == 0 and out_p % 128 == 0, \
        "params must come from prepare_embedding_fc_params"
    assert gamma_p.shape == (1, out_p) and beta_p.shape == (1, out_p)

    out_dtype = x.dtype
    x_item = jnp.dtype(x.dtype).itemsize
    w_item = jnp.dtype(w_p.dtype).itemsize
    o_item = jnp.dtype(out_dtype).itemsize

    # K-pad x only when in_size itself needs lane padding (batch is never padded).
    if in_p != in_size:
        x = jnp.pad(x, ((0, 0), (0, in_p - in_size)))

    # ---- generation-aware VMEM budget -------------------------------------
    vmem_cap = _vmem_capacity_bytes()
    budget = (vmem_cap * 3) // 4          # ~48 MiB v7x, ~96 MiB v5e/v6e
    dual_core = vmem_cap <= (64 << 20)    # v7x heuristic: 2 TCs share the grid

    w_bytes = in_p * out_p * w_item
    use_ktile = (w_bytes > _KTILE_THRESHOLD_BYTES) and (in_p % 128 == 0)

    # ---- K tile (large weights only) ---------------------------------------
    tk = in_p
    if use_ktile:
        tk = 128
        for cand in (2048, 1024, 512, 256, 128):
            if in_p % cand == 0 and 2 * cand * out_p * w_item <= budget // 2:
                tk = cand
                break

    # ---- batch tile ---------------------------------------------------------
    sub = _sublane(x.dtype)
    if tile_b is None:
        if use_ktile:
            per_row = 2 * tk * x_item + 2 * out_p * o_item + 4 * out_p * 4
            fixed = 2 * tk * out_p * w_item + 8 * out_p + (1 << 20)
        else:
            per_row = 2 * in_p * x_item + 2 * out_p * o_item + 3 * out_p * 4
            fixed = w_bytes + 8 * out_p + (1 << 20)
        avail = max(budget - fixed, per_row * sub)
        tb = min(min(1024, _round_up(B, sub)), ((avail // per_row) // sub) * sub)
        tb = max(tb, sub)
        if tb >= 256:                      # full-M MXU passes on v6e/v7x
            tb -= tb % 256
        elif tb >= 128:                    # 128-multiple floor (v5e MXU)
            tb -= tb % 128
        if dual_core and B > sub:          # keep both v7x TensorCores busy
            tb = min(tb, max(sub, _round_up(pl.cdiv(B, 2), sub)))
        tile_b = tb
    else:
        tile_b = _round_up(max(int(tile_b), sub), sub)

    nb = pl.cdiv(B, tile_b)
    inv_n = 1.0 / float(out_size)
    const_kwargs = dict(pipeline_mode=pl.Buffered(1))   # grid-invariant operands

    if use_ktile:
        kernel = functools.partial(_fused_kernel_ktiled, inv_n=inv_n)
        grid = (nb, in_p // tk)
        in_specs = [
            pl.BlockSpec((tile_b, tk), lambda i, k: (i, k)),
            pl.BlockSpec((tk, out_p), lambda i, k: (k, 0)),   # double-buffered slices
            pl.BlockSpec((1, out_p), lambda i, k: (0, 0), **const_kwargs),
            pl.BlockSpec((1, out_p), lambda i, k: (0, 0), **const_kwargs),
        ]
        out_specs = pl.BlockSpec((tile_b, out_p), lambda i, k: (i, 0))
        scratch = [pltpu.VMEM((tile_b, out_p), jnp.float32)]
        dim_sem = ("parallel", "arbitrary")
        est = (2 * tile_b * tk * x_item + 2 * tk * out_p * w_item
               + 2 * tile_b * out_p * o_item + 4 * tile_b * out_p * 4 + 8 * out_p)
    else:
        kernel = functools.partial(_fused_kernel, inv_n=inv_n)
        grid = (nb,)
        in_specs = [
            pl.BlockSpec((tile_b, in_p), lambda i: (i, 0)),
            pl.BlockSpec((in_p, out_p), lambda i: (0, 0), **const_kwargs),
            pl.BlockSpec((1, out_p), lambda i: (0, 0), **const_kwargs),
            pl.BlockSpec((1, out_p), lambda i: (0, 0), **const_kwargs),
        ]
        out_specs = pl.BlockSpec((tile_b, out_p), lambda i: (i, 0))
        scratch = []
        dim_sem = ("parallel",)
        est = (2 * tile_b * in_p * x_item + w_bytes
               + 2 * tile_b * out_p * o_item + 3 * tile_b * out_p * 4 + 8 * out_p)

    vmem_limit = int(min(budget, max(est + (8 << 20), 32 << 20)))

    cost = pl.CostEstimate(
        flops=2 * B * in_p * out_p,
        transcendentals=B,
        bytes_accessed=(B * in_p * x_item + w_bytes + 8 * out_p
                        + B * out_p * o_item),
    )

    out_padded = pl.pallas_call(
        kernel,
        out_shape=jax.ShapeDtypeStruct((B, out_p), out_dtype),
        grid_spec=pltpu.PrefetchScalarGridSpec(
            num_scalar_prefetch=0,
            grid=grid,
            in_specs=in_specs,
            out_specs=out_specs,
            scratch_shapes=scratch,
        ),
        compiler_params=pltpu.CompilerParams(
            dimension_semantics=dim_sem,
            vmem_limit_bytes=vmem_limit,
        ),
        cost_estimate=cost,
    )(x, w_p, gamma_p, beta_p)

    if out_p == out_size:
        return out_padded
    return out_padded[:, :out_size]


# --------------------------------------------------------------------------- test

def _reference(x, w, gamma, beta):
    y = jnp.dot(x.astype(jnp.float32), w.astype(jnp.float32))
    mean = jnp.mean(y, axis=-1, keepdims=True)
    var = jnp.mean((y - mean) ** 2, axis=-1, keepdims=True)
    yn = (y - mean) / jnp.sqrt(var + LN_EPS)
    return yn * gamma.astype(jnp.float32) + beta.astype(jnp.float32)


if __name__ == "__main__":
    key = jax.random.PRNGKey(0)

    # Case 1: tiny unaligned shapes (lane/K padding path, single grid step).
    # Case 2: bf16, batch not a tile multiple (partial last block, no batch pad).
    # Case 3: already 128-aligned features (no padding at all, multi-step grid).
    cases = [
        dict(batch=8,   in_size=16,  out_size=32,  dtype=jnp.float32,
             atol=1e-4, rtol=1e-4),
        dict(batch=200, in_size=40,  out_size=96,  dtype=jnp.bfloat16,
             atol=5e-2, rtol=5e-2),
        dict(batch=512, in_size=128, out_size=256, dtype=jnp.float32,
             atol=1e-3, rtol=1e-3),
    ]

    for c in cases:
        key, kx, kw, kg, kb = jax.random.split(key, 5)
        x = jax.random.normal(kx, (c["batch"], c["in_size"]),
                              dtype=jnp.float32).astype(c["dtype"])
        w = (0.1 * jax.random.normal(kw, (c["in_size"], c["out_size"]),
                                     dtype=jnp.float32)).astype(c["dtype"])
        gamma = 1.0 + 0.1 * jax.random.normal(kg, (c["out_size"],),
                                              dtype=jnp.float32)
        beta = 0.1 * jax.random.normal(kb, (c["out_size"],), dtype=jnp.float32)
        # use_bias=False (module default) -> no Linear bias term.

        # Parameter padding is hoisted: done once, not per forward call.
        w_p, gamma_p, beta_p, out_size = prepare_embedding_fc_params(w, gamma, beta)

        out = embedding_fc(x, w_p, gamma_p, beta_p, out_size)
        out = jax.block_until_ready(out)

        ref = _reference(x, w, gamma, beta)
        assert out.shape == (c["batch"], c["out_size"])
        assert out.dtype == c["dtype"]
        assert jnp.allclose(out.astype(jnp.float32), ref,
                            atol=c["atol"], rtol=c["rtol"]), \
            f"mismatch vs reference for case {c}"

    print("KERNEL_OK")
</pallas_src>

<mosaic_0001>
module attributes {stable_mosaic.version = 11 : i64} {
  func.func @_fused_kernel(%arg0: i32, %arg1: memref<8x128xf32, #tpu.memory_space<vmem>>, %arg2: memref<128x128xf32, #tpu.memory_space<vmem>>, %arg3: memref<1x128xf32, #tpu.memory_space<vmem>>, %arg4: memref<1x128xf32, #tpu.memory_space<vmem>>, %arg5: memref<8x128xf32, #tpu.memory_space<vmem>>) attributes {dimension_semantics = [#tpu.dimension_semantics<parallel>], iteration_bounds = array<i64: 1>, scalar_prefetch = 0 : i64, scratch_operands = 0 : i64, tpu.core_type = #tpu.core_type<tc>, window_params = [{transform_indices = @transform_0, window_bounds = array<i64: 8, 128>}, {pipeline_mode = #tpu.pipeline_mode<synchronous>, transform_indices = @transform_1, window_bounds = array<i64: 128, 128>}, {pipeline_mode = #tpu.pipeline_mode<synchronous>, transform_indices = @transform_2, window_bounds = array<i64: 1, 128>}, {pipeline_mode = #tpu.pipeline_mode<synchronous>, transform_indices = @transform_3, window_bounds = array<i64: 1, 128>}, {transform_indices = @transform_4, window_bounds = array<i64: 8, 128>}]} {
    %c0 = arith.constant 0 : index
    %c0_0 = arith.constant 0 : index
    %0 = vector.load %arg1[%c0, %c0_0] : memref<8x128xf32, #tpu.memory_space<vmem>>, vector<8x128xf32>
    %c0_1 = arith.constant 0 : index
    %c0_2 = arith.constant 0 : index
    %1 = vector.load %arg2[%c0_1, %c0_2] : memref<128x128xf32, #tpu.memory_space<vmem>>, vector<128x128xf32>
    %cst = arith.constant dense<0.000000e+00> : vector<8x128xf32>
    %2 = tpu.matmul %0, %1, %cst {dimension_numbers = #tpu.dot_dimension_numbers<[1], [0], [0], [1], [0, 0, 1, 1], [], []>} : vector<8x128xf32>, vector<128x128xf32>, vector<8x128xf32> -> vector<8x128xf32>
    %cst_3 = arith.constant dense<0.000000e+00> : vector<8xf32>
    %3 = vector.multi_reduction <add>, %2, %cst_3 [1] : vector<8x128xf32> to vector<8xf32>
    %4 = vector.shape_cast %3 : vector<8xf32> to vector<8x1xf32>
    %5 = arith.mulf %2, %2 : vector<8x128xf32>
    %cst_4 = arith.constant dense<0.000000e+00> : vector<8xf32>
    %6 = vector.multi_reduction <add>, %5, %cst_4 [1] : vector<8x128xf32> to vector<8xf32>
    %7 = vector.shape_cast %6 : vector<8xf32> to vector<8x1xf32>
    %cst_5 = arith.constant 3.125000e-02 : f32
    %8 = vector.broadcast %cst_5 : f32 to vector<8x1xf32>
    %9 = arith.mulf %4, %8 : vector<8x1xf32>
    %cst_6 = arith.constant 3.125000e-02 : f32
    %10 = vector.broadcast %cst_6 : f32 to vector<8x1xf32>
    %11 = arith.mulf %7, %10 : vector<8x1xf32>
    %12 = arith.mulf %9, %9 : vector<8x1xf32>
    %13 = arith.subf %11, %12 : vector<8x1xf32>
    %cst_7 = arith.constant 0.000000e+00 : f32
    %14 = vector.broadcast %cst_7 : f32 to vector<8x1xf32>
    %15 = arith.maximumf %13, %14 : vector<8x1xf32>
    %cst_8 = arith.constant 9.99999974E-6 : f32
    %16 = vector.broadcast %cst_8 : f32 to vector<8x1xf32>
    %17 = arith.addf %15, %16 : vector<8x1xf32>
    %18 = math.rsqrt %17 : vector<8x1xf32>
    %c0_9 = arith.constant 0 : index
    %c0_10 = arith.constant 0 : index
    %19 = vector.load %arg3[%c0_9, %c0_10] : memref<1x128xf32, #tpu.memory_space<vmem>>, vector<1x128xf32>
    %c0_11 = arith.constant 0 : index
    %c0_12 = arith.constant 0 : index
    %20 = vector.load %arg4[%c0_11, %c0_12] : memref<1x128xf32, #tpu.memory_space<vmem>>, vector<1x128xf32>
    %21 = vector.broadcast %9 : vector<8x1xf32> to vector<8x128xf32>
    %22 = arith.subf %2, %21 : vector<8x128xf32>
    %23 = vector.broadcast %18 : vector<8x1xf32> to vector<8x128xf32>
    %24 = arith.mulf %22, %23 : vector<8x128xf32>
    %25 = vector.broadcast %19 : vector<1x128xf32> to vector<8x128xf32>
    %26 = arith.mulf %24, %25 : vector<8x128xf32>
    %27 = vector.broadcast %20 : vector<1x128xf32> to vector<8x128xf32>
    %28 = arith.addf %26, %27 : vector<8x128xf32>
    %c0_13 = arith.constant 0 : index
    %c0_14 = arith.constant 0 : index
    %29 = vector.load %arg5[%c0_13, %c0_14] : memref<8x128xf32, #tpu.memory_space<vmem>>, vector<8x128xf32>
    tpu.vector_store %arg5[%c0_13, %c0_14], %28 {strides = array<i32>} : memref<8x128xf32, #tpu.memory_space<vmem>>, vector<8x128xf32>,
    return
  }
  func.func @transform_0(%arg0: i32) -> (i32, i32) {
    %c0_i32 = arith.constant 0 : i32
    %c0_i32_0 = arith.constant 0 : i32
    return %arg0, %c0_i32 : i32, i32
  }
  func.func @transform_1(%arg0: i32) -> (i32, i32) {
    %c0_i32 = arith.constant 0 : i32
    %c0_i32_0 = arith.constant 0 : i32
    %c0_i32_1 = arith.constant 0 : i32
    return %c0_i32, %c0_i32_0 : i32, i32
  }
  func.func @transform_2(%arg0: i32) -> (i32, i32) {
    %c0_i32 = arith.constant 0 : i32
    %c0_i32_0 = arith.constant 0 : i32
    %c0_i32_1 = arith.constant 0 : i32
    return %c0_i32, %c0_i32_0 : i32, i32
  }
  func.func @transform_3(%arg0: i32) -> (i32, i32) {
    %c0_i32 = arith.constant 0 : i32
    %c0_i32_0 = arith.constant 0 : i32
    %c0_i32_1 = arith.constant 0 : i32
    return %c0_i32, %c0_i32_0 : i32, i32
  }
  func.func @transform_4(%arg0: i32) -> (i32, i32) {
    %c0_i32 = arith.constant 0 : i32
    %c0_i32_0 = arith.constant 0 : i32
    return %arg0, %c0_i32 : i32, i32
  }
}

</mosaic_0001>

<llo_original>
// kernel: tpu_custom_call.1
$region0: #{tpu_custom_call.1}
  #allocation0 [shape = 'u32[]', space=smem, size = 0x4, offset = 0x4, fixed_abs, tag = 'smem constant byte address 0x4 - core index']
  #allocation1 [shape = 'u32[144,128]{1,0:T(1,128)}', space=vmem, size = 0x12000, scoped, tag = 'internal scratch']
  %s0 = inlined_call_operand.hbm [shape: f32[8,128], index: 0, kind: input, shape index: {}]
  %s1 = inlined_call_operand.hbm [shape: f32[128,128], index: 1, kind: input, shape index: {}]
  %s2 = inlined_call_operand.vmem [shape: f32[1,128], index: 2, kind: input, shape index: {}]
  %s3 = inlined_call_operand.vmem [shape: f32[1,128], index: 3, kind: input, shape index: {}]
  %s4 = inlined_call_operand.hbm [shape: f32[8,128], index: 4, kind: output, shape index: {}]
  %s5 = sld [smem:[#allocation0]]
  $region34: #{tpu_custom_call.1} parent=0
    _
  %s7 = ssub.s32 1, %s5
  %s8 = scalar_select 0, %s7, %s5
  $region1: #{tpu_custom_call.1} parent=0
    #allocation2 [shape = 'u8[4096]{0}', space=vmem, size = 0x1000, scoped, tag = 'input window, operand 0, single buffered']
    #allocation3 [shape = 's32[1]{0}', space=sflag, size = 0x4, scoped, tag = 'scoped memory for tpu_custom_call.1']
    #allocation4 [shape = 's32[1]{0}', space=sflag, size = 0x4, scoped, tag = 'scoped memory for tpu_custom_call.1']
    #allocation5 [shape = 'u8[65536]{0}', space=vmem, size = 0x10000, scoped, tag = 'input window, operand 1, single buffered']
    #allocation6 [shape = 's32[1]{0}', space=sflag, size = 0x4, scoped, tag = 'scoped memory for tpu_custom_call.1']
    #allocation7 [shape = 'u8[4096]{0}', space=vmem, size = 0x1000, scoped, tag = 'output window, operand 0, single buffered']
    %9 = vsyncpa [#allocation3], 0
    %10 = vsyncpa [#allocation6], 0
    %11 = vsyncpa [#allocation4], 0
    // Predicated region
    $region2: #{tpu_custom_call.1} parent=1 // pred_check
      _
    $region3: #{tpu_custom_call.1} parent=1 // pred_check_branch
      %13 = sbr.rel (0) target = $region5
    $region4: #{tpu_custom_call.1} parent=1 // pred_region
      %s15 = ssub.s32 128, 128
      %16 = vsyncadd [#allocation3], %s15
      %s18 = sshll.u32 [#allocation2], 4
      %s19 = int_to_ptr.vmem [resolvable:$true] %s18
      %21 = dma.hbm_to_vmem [thread:$0]  %s0, 128, %s19, [#allocation3]
    $region5: #{tpu_custom_call.1} parent=1 // pred_fallthru
      _
    // Predicated region
    $region6: #{tpu_custom_call.1} parent=1 // pred_check
      _
    $region7: #{tpu_custom_call.1} parent=1 // pred_check_branch
      %23 = sbr.rel (0) target = $region9
    $region8: #{tpu_custom_call.1} parent=1 // pred_region
      %s25 = ssub.s32 2048, 2048
      %26 = vsyncadd [#allocation6], %s25
      %s27 = sshll.u32 [#allocation5], 4
      %s28 = int_to_ptr.vmem [resolvable:$true] %s27
      %33 = dma.hbm_to_vmem [thread:$0]  %s1, 2048, %s28, [#allocation6], 128, 128, 8
    $region9: #{tpu_custom_call.1} parent=1 // pred_fallthru
      _
    // Predicated region
    $region10: #{tpu_custom_call.1} parent=1 // pred_check
      _
    $region11: #{tpu_custom_call.1} parent=1 // pred_check_branch
      %35 = sbr.rel (0) target = $region13
    $region12: #{tpu_custom_call.1} parent=1 // pred_region
      _
    $region13: #{tpu_custom_call.1} parent=1 // pred_fallthru
      _
    // Predicated region
    $region14: #{tpu_custom_call.1} parent=1 // pred_check
      _
    $region15: #{tpu_custom_call.1} parent=1 // pred_check_branch
      %37 = sbr.rel (0) target = $region17
    $region16: #{tpu_custom_call.1} parent=1 // pred_region
      _
    $region17: #{tpu_custom_call.1} parent=1 // pred_fallthru
      _
    // Predicated region
    $region18: #{tpu_custom_call.1} parent=1 // pred_check
      _
    $region19: #{tpu_custom_call.1} parent=1 // pred_check_branch
      %39 = sbr.rel (0) target = $region21
    $region20: #{tpu_custom_call.1} parent=1 // pred_region
      %40 = dma.done [#allocation3], 128
    $region21: #{tpu_custom_call.1} parent=1 // pred_fallthru
      _
    // Predicated region
    $region22: #{tpu_custom_call.1} parent=1 // pred_check
      _
    $region23: #{tpu_custom_call.1} parent=1 // pred_check_branch
      %42 = sbr.rel (0) target = $region25
    $region24: #{tpu_custom_call.1} parent=1 // pred_region
      %43 = dma.done [#allocation6], 2048
    $region25: #{tpu_custom_call.1} parent=1 // pred_fallthru
      _
    %v44 = vld [vmem:[#allocation2] sm:$0xff]
    %v45 = vld [vmem:[#allocation5] sm:$0xff]
    %v46 = vld [vmem:[#allocation5 + $0x8] sm:$0xff]
    %v47 = vld [vmem:[#allocation5 + $0x10] sm:$0xff]
    %v48 = vld [vmem:[#allocation5 + $0x18] sm:$0xff]
    %v49 = vld [vmem:[#allocation5 + $0x20] sm:$0xff]
    %v50 = vld [vmem:[#allocation5 + $0x28] sm:$0xff]
    %v51 = vld [vmem:[#allocation5 + $0x30] sm:$0xff]
    %v52 = vld [vmem:[#allocation5 + $0x38] sm:$0xff]
    %v53 = vld [vmem:[#allocation5 + $0x40] sm:$0xff]
    %v54 = vld [vmem:[#allocation5 + $0x48] sm:$0xff]
    %v55 = vld [vmem:[#allocation5 + $0x50] sm:$0xff]
    %v56 = vld [vmem:[#allocation5 + $0x58] sm:$0xff]
    %v57 = vld [vmem:[#allocation5 + $0x60] sm:$0xff]
    %v58 = vld [vmem:[#allocation5 + $0x68] sm:$0xff]
    %v59 = vld [vmem:[#allocation5 + $0x70] sm:$0xff]
    %v60 = vld [vmem:[#allocation5 + $0x78] sm:$0xff]
    %61 = vmatprep.subr.mxu0 0.0
    %62 = vmatpush1.msra.mxu0 %v45
    %63 = vmatprep.subr.mxu0 0.0
    %64 = vmatpush1.msra.mxu0 %v46
    %65 = vmatprep.subr.mxu0 0.0
    %66 = vmatpush1.msra.mxu0 %v47
    %67 = vmatprep.subr.mxu0 0.0
    %68 = vmatpush1.msra.mxu0 %v48
    %69 = vmatprep.subr.mxu0 0.0
    %70 = vmatpush1.msra.mxu0 %v49
    %71 = vmatprep.subr.mxu0 0.0
    %72 = vmatpush1.msra.mxu0 %v50
    %73 = vmatprep.subr.mxu0 0.0
    %74 = vmatpush1.msra.mxu0 %v51
    %75 = vmatprep.subr.mxu0 0.0
    %76 = vmatpush1.msra.mxu0 %v52
    %77 = vmatprep.subr.mxu0 0.0
    %78 = vmatpush1.msra.mxu0 %v53
    %79 = vmatprep.subr.mxu0 0.0
    %80 = vmatpush1.msra.mxu0 %v54
    %81 = vmatprep.subr.mxu0 0.0
    %82 = vmatpush1.msra.mxu0 %v55
    %83 = vmatprep.subr.mxu0 0.0
    %84 = vmatpush1.msra.mxu0 %v56
    %85 = vmatprep.subr.mxu0 0.0
    %86 = vmatpush1.msra.mxu0 %v57
    %87 = vmatprep.subr.mxu0 0.0
    %88 = vmatpush1.msra.mxu0 %v58
    %89 = vmatprep.subr.mxu0 0.0
    %90 = vmatpush1.msra.mxu0 %v59
    %91 = vmatprep.subr.mxu0 0.0
    %92 = vmatpush1.msra.mxu0 %v60
    %93 = vmatprep.subr.mxu0 0.0
    %94 = vmatpush1.msra.mxu0 0.0
    %95 = vmatprep.subr.mxu0 0.0
    %96 = vmatpush1.msra.mxu0 0.0
    %97 = vmatprep.subr.mxu0 0.0
    %98 = vmatpush1.msra.mxu0 0.0
    %99 = vmatprep.subr.mxu0 0.0
    %100 = vmatpush1.msra.mxu0 0.0
    %101 = vmatprep.subr.mxu0 0.0
    %102 = vmatpush1.msra.mxu0 0.0
    %103 = vmatprep.subr.mxu0 0.0
    %104 = vmatpush1.msra.mxu0 0.0
    %105 = vmatprep.subr.mxu0 0.0
    %106 = vmatpush1.msra.mxu0 0.0
    %107 = vmatprep.subr.mxu0 0.0
    %108 = vmatpush1.msra.mxu0 0.0
    %109 = vmatprep.subr.mxu0 0.0
    %110 = vmatpush1.msra.mxu0 0.0
    %111 = vmatprep.subr.mxu0 0.0
    %112 = vmatpush1.msra.mxu0 0.0
    %113 = vmatprep.subr.mxu0 0.0
    %114 = vmatpush1.msra.mxu0 0.0
    %115 = vmatprep.subr.mxu0 0.0
    %116 = vmatpush1.msra.mxu0 0.0
    %117 = vmatprep.subr.mxu0 0.0
    %118 = vmatpush1.msra.mxu0 0.0
    %119 = vmatprep.subr.mxu0 0.0
    %120 = vmatpush1.msra.mxu0 0.0
    %121 = vmatprep.subr.mxu0 0.0
    %122 = vmatpush1.msra.mxu0 0.0
    %123 = vmatprep.subr.mxu0 0.0
    %124 = vmatpush1.msra.mxu0 0.0
    %125 = vmatprep.mubr.f32.mxu0 0.0
    %126 = vmatmul.mubr.f32.gmra.mrb[0].mxu0 %v44
    %v127 = vpop.f32.mrb[0].mxu0
    %v128 = vadd.f32 0.0, %v127
    %v129 = vpop.f32.mrb[0].mxu0
    %130 = vdwg.mxu0
    %131 = vadd.xlane.f32.xlu0 %v128
    %v132 = vpop.xlane.xlu0 %131
    %v133 = vmul.f32 %v128, %v128
    %134 = vadd.xlane.f32.xlu0 %v133
    %v135 = vpop.xlane.xlu0 %134
    %v136 = vmul.f32 %v132, 0.03125
    %v137 = vmul.f32 %v135, 0.03125
    %v138 = vmul.f32 %v136, %v136
    %v139 = vsub.f32 %v137, %v138
    %v140 = vmax.f32 %v139, 0.0
    %v141 = vadd.f32 %v140, 1e-05
    %v142 = vrsqrt.pop %v141
    %v143 = vld [vmem:[%s2] sm:$0x1]
    %v144 = vld [vmem:[%s3] sm:$0x1]
    %v145 = vsub.f32 %v128, %v136
    %v146 = vmul.f32 %v145, %v142
    %v148 = vlaneseq
    %v149 = vshrl.u32 %v148, 7
    %v150 = vsub.s32 0, %v149
    %v151 = vrot.slane %v143, %v150
    %v153 = vmul.f32 %v146, %v151
    %v155 = vlaneseq
    %v156 = vshrl.u32 %v155, 7
    %v157 = vsub.s32 0, %v156
    %v158 = vrot.slane %v144, %v157
    %v160 = vadd.f32 %v153, %v158
    %161 = vst [vmem:[#allocation7] sm:$0xff] %v160
    // Predicated region
    $region26: #{tpu_custom_call.1} parent=1 // pred_check
      _
    $region27: #{tpu_custom_call.1} parent=1 // pred_check_branch
      %163 = sbr.rel (0) target = $region29
    $region28: #{tpu_custom_call.1} parent=1 // pred_region
      %s165 = ssub.s32 128, 128
      %166 = vsyncadd [#allocation4], %s165
      %s168 = sshll.u32 [#allocation7], 4
      %s169 = int_to_ptr.vmem [resolvable:$true] %s168
      %171 = dma.vmem_to_hbm [thread:$0]  %s169, 128, %s4, [#allocation4]
    $region29: #{tpu_custom_call.1} parent=1 // pred_fallthru
      _
    // Predicated region
    $region30: #{tpu_custom_call.1} parent=1 // pred_check
      _
    $region31: #{tpu_custom_call.1} parent=1 // pred_check_branch
      %173 = sbr.rel (0) target = $region33
    $region32: #{tpu_custom_call.1} parent=1 // pred_region
      %174 = dma.done [#allocation4], 128
    $region33: #{tpu_custom_call.1} parent=1 // pred_fallthru
      _
    %175 = vsyncpa [#allocation3], 1
    %176 = vsyncpa [#allocation6], 1
    %177 = vsyncpa [#allocation4], 1

</llo_original>
